<compile_context>
chip_gen: v6e
topology: v6e:2x2x1
jax: 0.10.0
libtpu: 0.0.40
codegen_flags: <defaults>
</compile_context>

<pallas_src>
import jax
import jax.numpy as jnp
from jax import lax
from jax.experimental import pallas as pl
from jax.experimental.pallas import tpu as pltpu


def _round_up(x, m):
    return -(-x // m) * m


def _make_kernel(TB, S, EP, O, OP):
    inv_s = 1.0 / S            # torch.mean over dim=-2 divides by S (not mask count)
    n_rows = 2 * TB            # sentence-1 rows then sentence-2 rows of this tile

    def kernel(sent_ref,             # SMEM (2*TB, S) int32 token ids for this tile
               msk_ref,              # VMEM (2*TB, S) f32 masks for this tile
               emb_hbm,              # HBM  (V, EP) raw ref (pl.ANY)
               w1t_ref, w1b_ref,     # VMEM (EP, HP) f32 fc1 weight halves (resident)
               w2_ref,               # VMEM (HP, H2P) f32 fc2 weight (resident)
               wo_ref,               # VMEM (H2P, OP) f32 fc_out weight (padded, resident)
               out_ref,              # VMEM (TB, 2*OP) f32 output: [logits | probs]
               emb_vmem,             # VMEM (V, EP) scratch: resident embedding table
               gath_ref,             # VMEM (2*TB*S, EP) f32 gathered embedding rows
               load_sem):            # DMA semaphore for the one-time table load

        # ---- 0) one-time load of the embedding table into VMEM -------------
        @pl.when(pl.program_id(0) == 0)
        def _load_table():
            cp = pltpu.make_async_copy(emb_hbm, emb_vmem, load_sem)
            cp.start()
            cp.wait()

        # ---- 1) gather this tile's rows from the resident table (vld only) --
        @pl.loop(0, n_rows)
        def _row(r):
            base = r * S
            @pl.loop(0, S)
            def _tok(s, base=base, r=r):
                tok = sent_ref[r, s]                                   # SMEM scalar
                row = emb_vmem[pl.ds(tok, 1), :].astype(jnp.float32)   # (1, EP)
                gath_ref[pl.ds(base + s, 1), :] = row

        # ---- 2) masked mean over S (f32; divide by S like torch.mean) -------
        emb_all = gath_ref[...].reshape(n_rows, S, EP)    # (2TB, S, EP)
        m = msk_ref[...]                                  # (2TB, S)
        aggr = jnp.sum(emb_all * m[:, :, None], axis=1) * inv_s        # (2TB, EP)
        a1 = aggr[:TB]                                    # sentence-1 aggregate
        a2 = aggr[TB:]                                    # sentence-2 aggregate

        # ---- 3) 3-layer MLP, f32 MXU matmuls, ReLU on the VPU ---------------
        # cat([a1, a2]) @ w1  ==  a1 @ w1_top + a2 @ w1_bot  (no lane concat)
        h = (jnp.dot(a1, w1t_ref[...], preferred_element_type=jnp.float32)
             + jnp.dot(a2, w1b_ref[...], preferred_element_type=jnp.float32))
        h = jnp.maximum(h, 0.0)
        h = jnp.dot(h, w2_ref[...], preferred_element_type=jnp.float32)
        h = jnp.maximum(h, 0.0)
        logits = jnp.dot(h, wo_ref[...], preferred_element_type=jnp.float32)  # (TB, OP)

        # ---- 4) stable softmax over the first O (real) lanes, exact divide ---
        col = lax.broadcasted_iota(jnp.int32, logits.shape, 1)
        ml = jnp.where(col < O, logits, -jnp.inf)
        mx = jnp.max(ml, axis=-1, keepdims=True)
        e = jnp.exp(ml - mx)
        probs = e / jnp.sum(e, axis=-1, keepdims=True)

        out_ref[:, :OP] = logits
        out_ref[:, OP:] = probs

    return kernel


def model_a1m1_forward(sentences1, sentences2, masks1, masks2,
                       embed_matrix, w1, w2, w_out, *,
                       batch_tile=128, table_dtype=jnp.float32):
    """ModelA1M1 forward (eval path, training=False: no dropout).

    Weight convention: y = x @ w, i.e. w1: (2E, H), w2: (H, H//2),
    w_out: (H//2, O) (torch Linear weights transposed).
    On v7x (64 MiB VMEM) pass table_dtype=jnp.bfloat16 for the resident table.
    """
    B, S = sentences1.shape
    V, E = embed_matrix.shape
    H = w1.shape[1]
    H2 = w2.shape[1]
    O = w_out.shape[1]
    assert w1.shape[0] == 2 * E and w2.shape[0] == H and w_out.shape[0] == H2

    EP = _round_up(E, 128)       # lane-dense embedding width (GloVe 300 -> 384)
    HP = _round_up(H, 128)
    H2P = _round_up(H2, 128)
    OP = 128                     # lane-dense output width
    assert O <= OP

    TB = min(_round_up(B, 8), max(8, _round_up(batch_tile, 8)))
    Bpad = _round_up(B, TB)
    n_tiles = Bpad // TB

    # ---- host-side packing: per-tile row layout [sent1 tile i ; sent2 tile i] --
    sent = jnp.stack([sentences1, sentences2], axis=0).astype(jnp.int32)   # (2,B,S)
    msk = jnp.stack([masks1, masks2], axis=0).astype(jnp.float32)          # (2,B,S)
    if Bpad != B:
        sent = jnp.pad(sent, ((0, 0), (0, Bpad - B), (0, 0)))
        msk = jnp.pad(msk, ((0, 0), (0, Bpad - B), (0, 0)))

    def tile_rows(x):
        return (x.reshape(2, n_tiles, TB, S)
                 .transpose(1, 0, 2, 3)
                 .reshape(n_tiles * 2 * TB, S))

    sent_rows = tile_rows(sent)          # (n_tiles*2*TB, S) int32
    msk_rows = tile_rows(msk)            # (n_tiles*2*TB, S) f32

    emb_pad = jnp.zeros((V, EP), table_dtype).at[:, :E].set(
        embed_matrix.astype(table_dtype))
    w1f = w1.astype(jnp.float32)
    w1_top = jnp.zeros((EP, HP), jnp.float32).at[:E, :H].set(w1f[:E])
    w1_bot = jnp.zeros((EP, HP), jnp.float32).at[:E, :H].set(w1f[E:])
    w2_p = jnp.zeros((HP, H2P), jnp.float32).at[:H, :H2].set(w2.astype(jnp.float32))
    wo_p = jnp.zeros((H2P, OP), jnp.float32).at[:H2, :O].set(w_out.astype(jnp.float32))

    kernel = _make_kernel(TB, S, EP, O, OP)

    # ---- explicit VMEM budget (table + gather are single-buffered scratch) ----
    itm = jnp.dtype(table_dtype).itemsize
    table_bytes = _round_up(V, 8) * EP * itm
    gather_bytes = _round_up(2 * TB * S, 8) * EP * 4
    weight_bytes = 2 * (2 * EP * HP + HP * H2P + H2P * OP) * 4     # double-buffered
    block_bytes = 2 * (2 * TB * _round_up(S, 128) * 4 + TB * 2 * OP * 4)
    vmem_limit = int(1.25 * (table_bytes + gather_bytes + weight_bytes + block_bytes))
    vmem_limit = max(32 * 1024 * 1024, min(vmem_limit + (4 << 20), 100 * 1024 * 1024))

    grid_spec = pltpu.PrefetchScalarGridSpec(
        num_scalar_prefetch=0,
        grid=(n_tiles,),
        in_specs=[
            pl.BlockSpec((2 * TB, S), lambda i: (i, 0),
                         memory_space=pltpu.SMEM),                  # token ids (per tile)
            pl.BlockSpec((2 * TB, S), lambda i: (i, 0)),            # masks (per tile)
            pl.BlockSpec(memory_space=pl.ANY),                      # embedding table (HBM)
            pl.BlockSpec((EP, HP), lambda i: (0, 0)),               # fc1 top half (resident)
            pl.BlockSpec((EP, HP), lambda i: (0, 0)),               # fc1 bottom half
            pl.BlockSpec((HP, H2P), lambda i: (0, 0)),              # fc2
            pl.BlockSpec((H2P, OP), lambda i: (0, 0)),              # fc_out (padded)
        ],
        out_specs=pl.BlockSpec((TB, 2 * OP), lambda i: (i, 0)),     # [logits | probs]
        scratch_shapes=[
            pltpu.VMEM((V, EP), table_dtype),                       # resident embed table
            pltpu.VMEM((2 * TB * S, EP), jnp.float32),              # gathered rows
            pltpu.SemaphoreType.DMA(()),
        ],
    )

    out = pl.pallas_call(
        kernel,
        out_shape=jax.ShapeDtypeStruct((Bpad, 2 * OP), jnp.float32),
        grid_spec=grid_spec,
        compiler_params=pltpu.CompilerParams(
            # "arbitrary": the one-time table load at program_id==0 requires a
            # sequential grid (a parallel axis would shard tiles over v7x's 2 TCs
            # and the second core would never run the load).
            dimension_semantics=("arbitrary",),
            vmem_limit_bytes=vmem_limit),
    )(sent_rows, msk_rows, emb_pad, w1_top, w1_bot, w2_p, wo_p)

    logits = out[:B, :O]
    probs = out[:B, OP:OP + O]
    return logits, probs


if __name__ == "__main__":
    key = jax.random.PRNGKey(0)
    k_emb, k_w1, k_w2, k_wo, k_s1, k_s2, k_m1, k_m2 = jax.random.split(key, 8)

    # Small synthetic shapes consistent with the module.
    VOCAB = 64       # stand-in for 26809
    E = 32           # embedding dim (stand-in for GloVe dim)
    H = 32           # hidden_dim
    O = 2            # output_dim (WiC is binary)
    B, S = 2, 8      # batch, sequence length

    embed_matrix = jax.random.normal(k_emb, (VOCAB, E), jnp.float32) * 0.1
    w1 = jax.random.uniform(k_w1, (2 * E, H), jnp.float32,
                            minval=-1.0, maxval=1.0) / jnp.sqrt(2.0 * E)
    w2 = jax.random.uniform(k_w2, (H, H // 2), jnp.float32,
                            minval=-1.0, maxval=1.0) / jnp.sqrt(1.0 * H)
    w_out = jax.random.uniform(k_wo, (H // 2, O), jnp.float32,
                               minval=-1.0, maxval=1.0) / jnp.sqrt(H / 2.0)

    sentences1 = jax.random.randint(k_s1, (B, S), 0, VOCAB, jnp.int32)
    sentences2 = jax.random.randint(k_s2, (B, S), 0, VOCAB, jnp.int32)
    masks1 = (jax.random.uniform(k_m1, (B, S)) > 0.3).astype(jnp.float32)
    masks2 = (jax.random.uniform(k_m2, (B, S)) > 0.3).astype(jnp.float32)

    # Pure-JAX reference (eval path, no dropout).
    def reference(s1, s2, m1, m2, emb, w1_, w2_, wo_):
        e1 = jnp.take(emb, s1, axis=0)
        e2 = jnp.take(emb, s2, axis=0)
        a1 = jnp.mean(e1 * m1[..., None], axis=1)
        a2 = jnp.mean(e2 * m2[..., None], axis=1)
        x = jnp.concatenate([a1, a2], axis=-1)
        h = jax.nn.relu(x @ w1_)
        h = jax.nn.relu(h @ w2_)
        lg = h @ wo_
        return lg, jax.nn.softmax(lg, axis=-1)

    # --- check 1: default (single tile) -------------------------------------
    logits, probs = model_a1m1_forward(sentences1, sentences2, masks1, masks2,
                                       embed_matrix, w1, w2, w_out)
    jax.block_until_ready((logits, probs))

    ref_logits, ref_probs = reference(sentences1, sentences2, masks1, masks2,
                                      embed_matrix, w1, w2, w_out)
    assert logits.shape == (B, O) and probs.shape == (B, O)
    assert bool(jnp.all(jnp.isfinite(logits))) and bool(jnp.all(jnp.isfinite(probs)))
    assert bool(jnp.allclose(jnp.sum(probs, axis=-1), 1.0, atol=1e-3))
    assert bool(jnp.allclose(logits, ref_logits, atol=5e-3, rtol=5e-2))
    assert bool(jnp.allclose(probs, ref_probs, atol=5e-3, rtol=5e-2))

    # --- check 2: multi-tile grid + batch padding (exercises resident table) --
    B2 = 20
    k_s3, k_s4, k_m3, k_m4 = jax.random.split(jax.random.PRNGKey(1), 4)
    s1b = jax.random.randint(k_s3, (B2, S), 0, VOCAB, jnp.int32)
    s2b = jax.random.randint(k_s4, (B2, S), 0, VOCAB, jnp.int32)
    m1b = (jax.random.uniform(k_m3, (B2, S)) > 0.3).astype(jnp.float32)
    m2b = (jax.random.uniform(k_m4, (B2, S)) > 0.3).astype(jnp.float32)

    lg2, pr2 = model_a1m1_forward(s1b, s2b, m1b, m2b, embed_matrix, w1, w2, w_out,
                                  batch_tile=8)
    jax.block_until_ready((lg2, pr2))
    ref_lg2, ref_pr2 = reference(s1b, s2b, m1b, m2b, embed_matrix, w1, w2, w_out)
    assert lg2.shape == (B2, O) and pr2.shape == (B2, O)
    assert bool(jnp.allclose(lg2, ref_lg2, atol=5e-3, rtol=5e-2))
    assert bool(jnp.allclose(pr2, ref_pr2, atol=5e-3, rtol=5e-2))

    print("KERNEL_OK")
</pallas_src>

<mosaic_0001>
module attributes {stable_mosaic.version = 11 : i64} {
  func.func @kernel(%arg0: i32, %arg1: memref<16x8xi32, #tpu.memory_space<smem>>, %arg2: memref<16x8xf32, #tpu.memory_space<vmem>>, %arg3: memref<64x128xf32, #tpu.memory_space<any>>, %arg4: memref<128x128xf32, #tpu.memory_space<vmem>>, %arg5: memref<128x128xf32, #tpu.memory_space<vmem>>, %arg6: memref<128x128xf32, #tpu.memory_space<vmem>>, %arg7: memref<128x128xf32, #tpu.memory_space<vmem>>, %arg8: memref<8x256xf32, #tpu.memory_space<vmem>>, %arg9: memref<64x128xf32, #tpu.memory_space<vmem>>, %arg10: memref<128x128xf32, #tpu.memory_space<vmem>>, %arg11: memref<!tpu.dma_semaphore, #tpu.memory_space<semaphore_mem>>) attributes {dimension_semantics = [#tpu.dimension_semantics<arbitrary>], iteration_bounds = array<i64: 1>, scalar_prefetch = 0 : i64, scratch_operands = 3 : i64, tpu.core_type = #tpu.core_type<tc>, window_params = [{transform_indices = @transform_0, window_bounds = array<i64: 16, 8>}, {transform_indices = @transform_1, window_bounds = array<i64: 16, 8>}, {}, {pipeline_mode = #tpu.pipeline_mode<synchronous>, transform_indices = @transform_3, window_bounds = array<i64: 128, 128>}, {pipeline_mode = #tpu.pipeline_mode<synchronous>, transform_indices = @transform_4, window_bounds = array<i64: 128, 128>}, {pipeline_mode = #tpu.pipeline_mode<synchronous>, transform_indices = @transform_5, window_bounds = array<i64: 128, 128>}, {pipeline_mode = #tpu.pipeline_mode<synchronous>, transform_indices = @transform_6, window_bounds = array<i64: 128, 128>}, {transform_indices = @transform_7, window_bounds = array<i64: 8, 256>}]} {
    %c0_i32 = arith.constant 0 : i32
    %0 = arith.cmpi eq, %arg0, %c0_i32 : i32
    %1 = arith.extui %0 : i1 to i32
    %c0_i32_0 = arith.constant 0 : i32
    %2 = arith.cmpi ne, %1, %c0_i32_0 : i32
    scf.if %2 {
      tpu.enqueue_dma source(%arg3 : memref<64x128xf32, #tpu.memory_space<any>>) target(%arg9 : memref<64x128xf32, #tpu.memory_space<vmem>>) target_semaphore(%arg11 : memref<!tpu.dma_semaphore, #tpu.memory_space<semaphore_mem>>)
      tpu.wait_dma2 semaphore(%arg11 : memref<!tpu.dma_semaphore, #tpu.memory_space<semaphore_mem>>) src(%arg3 : memref<64x128xf32, #tpu.memory_space<any>>) dst(%arg9 : memref<64x128xf32, #tpu.memory_space<vmem>>)
    } else {
    }
    %c0_i32_1 = arith.constant 0 : i32
    %c16_i32 = arith.constant 16 : i32
    %3 = arith.addi %c0_i32_1, %c16_i32 : i32
    %c1_i32 = arith.constant 1 : i32
    scf.for %arg12 = %c0_i32_1 to %3 step %c1_i32  : i32 {
      %c1_i32_27 = arith.constant 1 : i32
      %44 = arith.muli %arg12, %c1_i32_27 : i32
      %c0_i32_28 = arith.constant 0 : i32
      %45 = arith.addi %c0_i32_28, %44 : i32
      %c8_i32 = arith.constant 8 : i32
      %46 = arith.muli %45, %c8_i32 : i32
      %c0_i32_29 = arith.constant 0 : i32
      %c8_i32_30 = arith.constant 8 : i32
      %47 = arith.addi %c0_i32_29, %c8_i32_30 : i32
      %c1_i32_31 = arith.constant 1 : i32
      scf.for %arg13 = %c0_i32_29 to %47 step %c1_i32_31  : i32 {
        %c1_i32_33 = arith.constant 1 : i32
        %48 = arith.muli %arg13, %c1_i32_33 : i32
        %c0_i32_34 = arith.constant 0 : i32
        %49 = arith.addi %c0_i32_34, %48 : i32
        %50 = arith.index_cast %45 : i32 to index
        %51 = arith.index_cast %49 : i32 to index
        %52 = memref.load %arg1[%50, %51] : memref<16x8xi32, #tpu.memory_space<smem>>
        %53 = arith.index_cast %52 : i32 to index
        %c0_35 = arith.constant 0 : index
        %54 = vector.load %arg9[%53, %c0_35] : memref<64x128xf32, #tpu.memory_space<vmem>>, vector<1x128xf32>
        %55 = arith.addi %46, %49 : i32
        %56 = arith.index_cast %55 : i32 to index
        %c0_36 = arith.constant 0 : index
        %57 = vector.load %arg10[%56, %c0_36] : memref<128x128xf32, #tpu.memory_space<vmem>>, vector<1x128xf32>
        tpu.vector_store %arg10[%56, %c0_36], %54 {strides = array<i32>} : memref<128x128xf32, #tpu.memory_space<vmem>>, vector<1x128xf32>,
      }
      %c8_i32_32 = arith.constant 8 : i32
    }
    %c16_i32_2 = arith.constant 16 : i32
    %c0 = arith.constant 0 : index
    %c0_3 = arith.constant 0 : index
    %4 = vector.load %arg10[%c0, %c0_3] : memref<128x128xf32, #tpu.memory_space<vmem>>, vector<128x128xf32>
    %5 = vector.shape_cast %4 : vector<128x128xf32> to vector<16x8x128xf32>
    %c0_4 = arith.constant 0 : index
    %c0_5 = arith.constant 0 : index
    %6 = vector.load %arg2[%c0_4, %c0_5] : memref<16x8xf32, #tpu.memory_space<vmem>>, vector<16x8xf32>
    %7 = vector.shape_cast %6 : vector<16x8xf32> to vector<16x8x1xf32>
    %8 = vector.broadcast %7 : vector<16x8x1xf32> to vector<16x8x128xf32>
    %9 = arith.mulf %5, %8 : vector<16x8x128xf32>
    %cst = arith.constant dense<0.000000e+00> : vector<16x128xf32>
    %10 = vector.multi_reduction <add>, %9, %cst [1] : vector<16x8x128xf32> to vector<16x128xf32>
    %cst_6 = arith.constant 1.250000e-01 : f32
    %11 = vector.broadcast %cst_6 : f32 to vector<16x128xf32>
    %12 = arith.mulf %10, %11 : vector<16x128xf32>
    %13 = vector.extract_strided_slice %12 {offsets = [0, 0], sizes = [8, 128], strides = [1, 1]} : vector<16x128xf32> to vector<8x128xf32>
    %14 = vector.extract_strided_slice %12 {offsets = [8, 0], sizes = [8, 128], strides = [1, 1]} : vector<16x128xf32> to vector<8x128xf32>
    %c0_7 = arith.constant 0 : index
    %c0_8 = arith.constant 0 : index
    %15 = vector.load %arg4[%c0_7, %c0_8] : memref<128x128xf32, #tpu.memory_space<vmem>>, vector<128x128xf32>
    %cst_9 = arith.constant dense<0.000000e+00> : vector<8x128xf32>
    %16 = tpu.matmul %13, %15, %cst_9 {dimension_numbers = #tpu.dot_dimension_numbers<[1], [0], [0], [1], [0, 0, 1, 1], [], []>} : vector<8x128xf32>, vector<128x128xf32>, vector<8x128xf32> -> vector<8x128xf32>
    %c0_10 = arith.constant 0 : index
    %c0_11 = arith.constant 0 : index
    %17 = vector.load %arg5[%c0_10, %c0_11] : memref<128x128xf32, #tpu.memory_space<vmem>>, vector<128x128xf32>
    %cst_12 = arith.constant dense<0.000000e+00> : vector<8x128xf32>
    %18 = tpu.matmul %14, %17, %cst_12 {dimension_numbers = #tpu.dot_dimension_numbers<[1], [0], [0], [1], [0, 0, 1, 1], [], []>} : vector<8x128xf32>, vector<128x128xf32>, vector<8x128xf32> -> vector<8x128xf32>
    %19 = arith.addf %16, %18 : vector<8x128xf32>
    %cst_13 = arith.constant 0.000000e+00 : f32
    %20 = vector.broadcast %cst_13 : f32 to vector<8x128xf32>
    %21 = arith.maximumf %19, %20 : vector<8x128xf32>
    %c0_14 = arith.constant 0 : index
    %c0_15 = arith.constant 0 : index
    %22 = vector.load %arg6[%c0_14, %c0_15] : memref<128x128xf32, #tpu.memory_space<vmem>>, vector<128x128xf32>
    %cst_16 = arith.constant dense<0.000000e+00> : vector<8x128xf32>
    %23 = tpu.matmul %21, %22, %cst_16 {dimension_numbers = #tpu.dot_dimension_numbers<[1], [0], [0], [1], [0, 0, 1, 1], [], []>} : vector<8x128xf32>, vector<128x128xf32>, vector<8x128xf32> -> vector<8x128xf32>
    %cst_17 = arith.constant 0.000000e+00 : f32
    %24 = vector.broadcast %cst_17 : f32 to vector<8x128xf32>
    %25 = arith.maximumf %23, %24 : vector<8x128xf32>
    %c0_18 = arith.constant 0 : index
    %c0_19 = arith.constant 0 : index
    %26 = vector.load %arg7[%c0_18, %c0_19] : memref<128x128xf32, #tpu.memory_space<vmem>>, vector<128x128xf32>
    %cst_20 = arith.constant dense<0.000000e+00> : vector<8x128xf32>
    %27 = tpu.matmul %25, %26, %cst_20 {dimension_numbers = #tpu.dot_dimension_numbers<[1], [0], [0], [1], [0, 0, 1, 1], [], []>} : vector<8x128xf32>, vector<128x128xf32>, vector<8x128xf32> -> vector<8x128xf32>
    %28 = tpu.iota {dimensions = array<i32: 1>} : vector<8x128xi32>
    %c2_i32 = arith.constant 2 : i32
    %29 = vector.broadcast %c2_i32 : i32 to vector<8x128xi32>
    %30 = arith.cmpi slt, %28, %29 : vector<8x128xi32>
    %cst_21 = arith.constant 0xFF800000 : f32
    %31 = vector.broadcast %cst_21 : f32 to vector<8x128xf32>
    %32 = arith.select %30, %27, %31 : vector<8x128xi1>, vector<8x128xf32>
    %cst_22 = arith.constant dense<0xFF800000> : vector<8xf32>
    %33 = vector.multi_reduction <maximumf>, %32, %cst_22 [1] : vector<8x128xf32> to vector<8xf32>
    %34 = vector.shape_cast %33 : vector<8xf32> to vector<8x1xf32>
    %35 = vector.broadcast %34 : vector<8x1xf32> to vector<8x128xf32>
    %36 = arith.subf %32, %35 : vector<8x128xf32>
    %37 = math.exp %36 : vector<8x128xf32>
    %cst_23 = arith.constant dense<0.000000e+00> : vector<8xf32>
    %38 = vector.multi_reduction <add>, %37, %cst_23 [1] : vector<8x128xf32> to vector<8xf32>
    %39 = vector.shape_cast %38 : vector<8xf32> to vector<8x1xf32>
    %40 = vector.broadcast %39 : vector<8x1xf32> to vector<8x128xf32>
    %41 = arith.divf %37, %40 : vector<8x128xf32>
    %c0_24 = arith.constant 0 : index
    %c0_25 = arith.constant 0 : index
    %42 = vector.load %arg8[%c0_24, %c0_25] : memref<8x256xf32, #tpu.memory_space<vmem>>, vector<8x128xf32>
    tpu.vector_store %arg8[%c0_24, %c0_25], %27 {strides = array<i32>} : memref<8x256xf32, #tpu.memory_space<vmem>>, vector<8x128xf32>,
    %c0_26 = arith.constant 0 : index
    %c128 = arith.constant 128 : index
    %43 = vector.load %arg8[%c0_26, %c128] : memref<8x256xf32, #tpu.memory_space<vmem>>, vector<8x128xf32>
    tpu.vector_store %arg8[%c0_26, %c128], %41 {strides = array<i32>} : memref<8x256xf32, #tpu.memory_space<vmem>>, vector<8x128xf32>,
    return
  }
  func.func @transform_0(%arg0: i32) -> (i32, i32) {
    %c0_i32 = arith.constant 0 : i32
    %c0_i32_0 = arith.constant 0 : i32
    return %arg0, %c0_i32 : i32, i32
  }
  func.func @transform_1(%arg0: i32) -> (i32, i32) {
    %c0_i32 = arith.constant 0 : i32
    %c0_i32_0 = arith.constant 0 : i32
    return %arg0, %c0_i32 : i32, i32
  }
  func.func @transform_3(%arg0: i32) -> (i32, i32) {
    %c0_i32 = arith.constant 0 : i32
    %c0_i32_0 = arith.constant 0 : i32
    %c0_i32_1 = arith.constant 0 : i32
    return %c0_i32, %c0_i32_0 : i32, i32
  }
  func.func @transform_4(%arg0: i32) -> (i32, i32) {
    %c0_i32 = arith.constant 0 : i32
    %c0_i32_0 = arith.constant 0 : i32
    %c0_i32_1 = arith.constant 0 : i32
    return %c0_i32, %c0_i32_0 : i32, i32
  }
  func.func @transform_5(%arg0: i32) -> (i32, i32) {
    %c0_i32 = arith.constant 0 : i32
    %c0_i32_0 = arith.constant 0 : i32
    %c0_i32_1 = arith.constant 0 : i32
    return %c0_i32, %c0_i32_0 : i32, i32
  }
  func.func @transform_6(%arg0: i32) -> (i32, i32) {
    %c0_i32 = arith.constant 0 : i32
    %c0_i32_0 = arith.constant 0 : i32
    %c0_i32_1 = arith.constant 0 : i32
    return %c0_i32, %c0_i32_0 : i32, i32
  }
  func.func @transform_7(%arg0: i32) -> (i32, i32) {
    %c0_i32 = arith.constant 0 : i32
    %c0_i32_0 = arith.constant 0 : i32
    return %arg0, %c0_i32 : i32, i32
  }
}

</mosaic_0001>

<llo_original>
// kernel: tpu_custom_call.1
$region0: #{tpu_custom_call.1}
  #allocation0 [shape = 'u32[]', space=smem, size = 0x4, offset = 0x4, fixed_abs, tag = 'smem constant byte address 0x4 - core index']
  #allocation1 [shape = 'u32[144,128]{1,0:T(1,128)}', space=vmem, size = 0x12000, scoped, tag = 'internal scratch']
  #allocation2 [shape = 'f32[64,128]{1,0:T(8,128)}', space=vmem, size = 0x8000, scoped, tag = 'scratch operand']
  #allocation3 [shape = 'f32[128,128]{1,0:T(8,128)}', space=vmem, size = 0x10000, scoped, tag = 'scratch operand']
  #allocation4 [shape = 's32[1]{0}', space=sflag, size = 0x4, scoped, tag = 'scratch operand']
  #allocation16 [shape = 's32[]', space=sflag, size = 0x4, offset = 0, fixed_abs, tag = 'sflag constant byte address 0x0 - dummy sync flag']
  #allocation17 [shape = 's32[]', space=sflag, size = 0x4, offset = 0, fixed_abs, tag = 'sflag constant byte address 0x0 - dummy sync flag']
  #allocation18 [shape = 'u32[]', space=smem, size = 0x4, offset = 0x44, fixed_abs, tag = 'smem constant byte address 0x44 - assertion arg 0']
  #allocation19 [shape = 'u32[]', space=smem, size = 0x4, offset = 0x48, fixed_abs, tag = 'smem constant byte address 0x48 - assertion arg 1']
  %s0 = inlined_call_operand.vmem [shape: s32[16,8], index: 0, kind: input, shape index: {}]
  %s1 = inlined_call_operand.vmem [shape: f32[16,8], index: 1, kind: input, shape index: {}]
  %s2 = inlined_call_operand.hbm [shape: f32[64,128], index: 2, kind: input, shape index: {}]
  %s3 = inlined_call_operand.hbm [shape: f32[128,128], index: 3, kind: input, shape index: {}]
  %s4 = inlined_call_operand.hbm [shape: f32[128,128], index: 4, kind: input, shape index: {}]
  %s5 = inlined_call_operand.hbm [shape: f32[128,128], index: 5, kind: input, shape index: {}]
  %s6 = inlined_call_operand.hbm [shape: f32[128,128], index: 6, kind: input, shape index: {}]
  %s7 = inlined_call_operand.hbm [shape: f32[8,256], index: 7, kind: output, shape index: {}]
  %s8 = sld [smem:[#allocation0]]
  $region76: #{tpu_custom_call.1} parent=0
    _
  %s10 = ssub.s32 1, %s8
  %s11 = scalar_select 0, %s10, %s8
  $region1: #{tpu_custom_call.1} parent=0
    #allocation5 [shape = 'u8[8192]{0}', space=smem, size = 0x2000, scoped, tag = 'input window, operand 0, single buffered']
    #allocation6 [shape = 's32[1]{0}', space=sflag, size = 0x4, scoped, tag = 'scoped memory for tpu_custom_call.1']
    #allocation7 [shape = 's32[1]{0}', space=sflag, size = 0x4, scoped, tag = 'scoped memory for tpu_custom_call.1']
    #allocation8 [shape = 's32[1]{0}', space=sflag, size = 0x4, scoped, tag = 'scoped memory for tpu_custom_call.1']
    #allocation9 [shape = 'u8[65536]{0}', space=vmem, size = 0x10000, scoped, tag = 'input window, operand 3, single buffered']
    #allocation10 [shape = 'u8[65536]{0}', space=vmem, size = 0x10000, scoped, tag = 'input window, operand 4, single buffered']
    #allocation11 [shape = 's32[1]{0}', space=sflag, size = 0x4, scoped, tag = 'scoped memory for tpu_custom_call.1']
    #allocation12 [shape = 'u8[65536]{0}', space=vmem, size = 0x10000, scoped, tag = 'input window, operand 5, single buffered']
    #allocation13 [shape = 'u8[65536]{0}', space=vmem, size = 0x10000, scoped, tag = 'input window, operand 6, single buffered']
    #allocation14 [shape = 's32[1]{0}', space=sflag, size = 0x4, scoped, tag = 'scoped memory for tpu_custom_call.1']
    #allocation15 [shape = 'u8[8192]{0}', space=vmem, size = 0x2000, scoped, tag = 'output window, operand 0, single buffered']
    %12 = vsyncpa [#allocation8], 0
    %13 = vsyncpa [#allocation6], 0
    %14 = vsyncpa [#allocation11], 0
    %15 = vsyncpa [#allocation14], 0
    %16 = vsyncpa [#allocation7], 0
    // Predicated region
    $region2: #{tpu_custom_call.1} parent=1 // pred_check
      _
    $region3: #{tpu_custom_call.1} parent=1 // pred_check_branch
      %18 = sbr.rel (0) target = $region5
    $region4: #{tpu_custom_call.1} parent=1 // pred_region
      %s20 = ssub.s32 256, 256
      %21 = vsyncadd [#allocation8], %s20
      %s22 = sshll.u32 %s0, 4
      %s23 = int_to_ptr.vmem [resolvable:$true] %s22
      %28 = dma.vmem_to_smem %s23, 256, [#allocation5], [#allocation8], 128, 128, 8
    $region5: #{tpu_custom_call.1} parent=1 // pred_fallthru
      _
    // Predicated region
    $region6: #{tpu_custom_call.1} parent=1 // pred_check
      _
    $region7: #{tpu_custom_call.1} parent=1 // pred_check_branch
      %30 = sbr.rel (0) target = $region9
    $region8: #{tpu_custom_call.1} parent=1 // pred_region
      _
    $region9: #{tpu_custom_call.1} parent=1 // pred_fallthru
      _
    // Predicated region
    $region10: #{tpu_custom_call.1} parent=1 // pred_check
      _
    $region11: #{tpu_custom_call.1} parent=1 // pred_check_branch
      %32 = sbr.rel (0) target = $region13
    $region12: #{tpu_custom_call.1} parent=1 // pred_region
      %s34 = ssub.s32 2048, 2048
      %35 = vsyncadd [#allocation6], %s34
      %s36 = sshll.u32 [#allocation9], 4
      %s37 = int_to_ptr.vmem [resolvable:$true] %s36
      %42 = dma.hbm_to_vmem [thread:$0]  %s3, 2048, %s37, [#allocation6], 128, 128, 8
    $region13: #{tpu_custom_call.1} parent=1 // pred_fallthru
      _
    // Predicated region
    $region14: #{tpu_custom_call.1} parent=1 // pred_check
      _
    $region15: #{tpu_custom_call.1} parent=1 // pred_check_branch
      %44 = sbr.rel (0) target = $region17
    $region16: #{tpu_custom_call.1} parent=1 // pred_region
      %s46 = ssub.s32 2048, 2048
      %47 = vsyncadd [#allocation11], %s46
      %s48 = sshll.u32 [#allocation10], 4
      %s49 = int_to_ptr.vmem [resolvable:$true] %s48
      %54 = dma.hbm_to_vmem [thread:$0]  %s4, 2048, %s49, [#allocation11], 128, 128, 8
    $region17: #{tpu_custom_call.1} parent=1 // pred_fallthru
      _
    // Predicated region
    $region18: #{tpu_custom_call.1} parent=1 // pred_check
      _
    $region19: #{tpu_custom_call.1} parent=1 // pred_check_branch
      %56 = sbr.rel (0) target = $region21
    $region20: #{tpu_custom_call.1} parent=1 // pred_region
      %s58 = ssub.s32 2048, 2048
      %59 = vsyncadd [#allocation11], %s58
      %s60 = sshll.u32 [#allocation12], 4
      %s61 = int_to_ptr.vmem [resolvable:$true] %s60
      %66 = dma.hbm_to_vmem [thread:$0]  %s5, 2048, %s61, [#allocation11], 128, 128, 8
    $region21: #{tpu_custom_call.1} parent=1 // pred_fallthru
      _
    // Predicated region
    $region22: #{tpu_custom_call.1} parent=1 // pred_check
      _
    $region23: #{tpu_custom_call.1} parent=1 // pred_check_branch
      %68 = sbr.rel (0) target = $region25
    $region24: #{tpu_custom_call.1} parent=1 // pred_region
      %s70 = ssub.s32 2048, 2048
      %71 = vsyncadd [#allocation14], %s70
      %s72 = sshll.u32 [#allocation13], 4
      %s73 = int_to_ptr.vmem [resolvable:$true] %s72
      %78 = dma.hbm_to_vmem [thread:$0]  %s6, 2048, %s73, [#allocation14], 128, 128, 8
    $region25: #{tpu_custom_call.1} parent=1 // pred_fallthru
      _
    // Predicated region
    $region26: #{tpu_custom_call.1} parent=1 // pred_check
      _
    $region27: #{tpu_custom_call.1} parent=1 // pred_check_branch
      %80 = sbr.rel (0) target = $region29
    $region28: #{tpu_custom_call.1} parent=1 // pred_region
      %81 = dma.done [#allocation8], 256
    $region29: #{tpu_custom_call.1} parent=1 // pred_fallthru
      _
    // Predicated region
    $region30: #{tpu_custom_call.1} parent=1 // pred_check
      _
    $region31: #{tpu_custom_call.1} parent=1 // pred_check_branch
      %83 = sbr.rel (0) target = $region33
    $region32: #{tpu_custom_call.1} parent=1 // pred_region
      %84 = dma.done [#allocation6], 2048
    $region33: #{tpu_custom_call.1} parent=1 // pred_fallthru
      _
    // Predicated region
    $region34: #{tpu_custom_call.1} parent=1 // pred_check
      _
    $region35: #{tpu_custom_call.1} parent=1 // pred_check_branch
      %86 = sbr.rel (0) target = $region37
    $region36: #{tpu_custom_call.1} parent=1 // pred_region
      %87 = dma.done [#allocation11], 2048
    $region37: #{tpu_custom_call.1} parent=1 // pred_fallthru
      _
    // Predicated region
    $region38: #{tpu_custom_call.1} parent=1 // pred_check
      _
    $region39: #{tpu_custom_call.1} parent=1 // pred_check_branch
      %89 = sbr.rel (0) target = $region41
    $region40: #{tpu_custom_call.1} parent=1 // pred_region
      %90 = dma.done [#allocation11], 2048
    $region41: #{tpu_custom_call.1} parent=1 // pred_fallthru
      _
    // Predicated region
    $region42: #{tpu_custom_call.1} parent=1 // pred_check
      _
    $region43: #{tpu_custom_call.1} parent=1 // pred_check_branch
      %92 = sbr.rel (0) target = $region45
    $region44: #{tpu_custom_call.1} parent=1 // pred_region
      %93 = dma.done [#allocation14], 2048
    $region45: #{tpu_custom_call.1} parent=1 // pred_fallthru
      _
    %94 = sfence
    %p95 = scmp.eq.s32.totalorder 0, 0
    // Predicated region
    $region46: #{tpu_custom_call.1} parent=1 // pred_check
      %p96 = pneg %p95
    $region47: #{tpu_custom_call.1} parent=1 // pred_check_branch
      %98 = sbr.rel (%p96) target = $region49
    $region48: #{tpu_custom_call.1} parent=1 // pred_region
      // Predicated region
      $region50: #{tpu_custom_call.1} parent=48 // pred_check
        _
      $region51: #{tpu_custom_call.1} parent=48 // pred_check_branch
        %100 = sbr.rel target = $region53
      $region52: #{tpu_custom_call.1} parent=48 // pred_region
        %101 = sst [smem:[#allocation18]] [#allocation17]
        %102 = sst [smem:[#allocation19]] [#allocation16]
      $region53: #{tpu_custom_call.1} parent=48 // pred_fallthru
        _
      %104 = shalt.err (0)
      %s106 = sshll.u32 [#allocation2], 4
      %s107 = int_to_ptr.vmem [resolvable:$true] %s106
      %109 = dma.hbm_to_vmem [thread:$0]  %s2, 1024, %s107, [#allocation4]
      %s110 = smul.u32 64, 1
      %s111 = sshll.u32 %s110, 4
      %112 = dma.done [#allocation4], %s111
    $region49: #{tpu_custom_call.1} parent=1 // pred_fallthru
      _
    loop: start=0, step=1, limit=16
    $region54: #{tpu_custom_call.1} parent=1 // loop_pre_header
      _
    $region55: #{tpu_custom_call.1} parent=1 // loop_header
      %s114 = sphi 0, %s118
      %p115 = scmp.ge.s32.totalorder %s114, 16
    $region56: #{tpu_custom_call.1} parent=1 // loop_header_branch
      %117 = sbr.rel (%p115) target = $region60
    $region57: #{tpu_custom_call.1} parent=1 // loop_body
      %s119 = smul.u32 %s114, 8
      loop: start=0, step=1, limit=8
      $region61: #{tpu_custom_call.1} parent=57 // loop_pre_header
        _
      $region62: #{tpu_custom_call.1} parent=57 // loop_header
        %s121 = sphi 0, %s125
        %p122 = scmp.ge.s32.totalorder %s121, 8
      $region63: #{tpu_custom_call.1} parent=57 // loop_header_branch
        %124 = sbr.rel (%p122) target = $region67
      $region64: #{tpu_custom_call.1} parent=57 // loop_body
        %s126 = sshra.s32 %s121, 7
        %s127 = sand.u32 %s121, 127
        %s128 = sadd.s32 %s126, %s114
        %s129 = smul.u32 %s128, 128
        %s130 = sshra.s32 %s121, 7
        %s131 = sand.u32 %s121, 127
        %s132 = sadd.s32 %s129, %s131
        %s133 = sld [smem:[#allocation5 + %s132]]
        %s134 = scalar_lea.vmem [#allocation2], %s133
        %v135 = vld [vmem:[%s134] sm:$0x1]
        %s136 = sadd.s32 %s119, %s121
        %s137 = scalar_lea.vmem [#allocation3], %s136
        %138 = vst [vmem:[%s137] sm:$0x1] %v135
      $region65: #{tpu_custom_call.1} parent=57 // loop_footer
        %s125 = sadd.s32 1, %s121
      $region66: #{tpu_custom_call.1} parent=57 // loop_footer_branch
        %120 = sbr.rel target = $region62
      $region67: #{tpu_custom_call.1} parent=57 // loop_exit
        _
    $region58: #{tpu_custom_call.1} parent=1 // loop_footer
      %s118 = sadd.s32 1, %s114
    $region59: #{tpu_custom_call.1} parent=1 // loop_footer_branch
      %113 = sbr.rel target = $region55
    $region60: #{tpu_custom_call.1} parent=1 // loop_exit
      _
    %v139 = vld [vmem:[#allocation3] sm:$0xff]
    %v140 = vld [vmem:[#allocation3 + $0x8] sm:$0xff]
    %v141 = vld [vmem:[#allocation3 + $0x10] sm:$0xff]
    %v142 = vld [vmem:[#allocation3 + $0x18] sm:$0xff]
    %v143 = vld [vmem:[#allocation3 + $0x20] sm:$0xff]
    %v144 = vld [vmem:[#allocation3 + $0x28] sm:$0xff]
    %v145 = vld [vmem:[#allocation3 + $0x30] sm:$0xff]
    %v146 = vld [vmem:[#allocation3 + $0x38] sm:$0xff]
    %v147 = vld [vmem:[#allocation3 + $0x40] sm:$0xff]
    %v148 = vld [vmem:[#allocation3 + $0x48] sm:$0xff]
    %v149 = vld [vmem:[#allocation3 + $0x50] sm:$0xff]
    %v150 = vld [vmem:[#allocation3 + $0x58] sm:$0xff]
    %v151 = vld [vmem:[#allocation3 + $0x60] sm:$0xff]
    %v152 = vld [vmem:[#allocation3 + $0x68] sm:$0xff]
    %v153 = vld [vmem:[#allocation3 + $0x70] sm:$0xff]
    %v154 = vld [vmem:[#allocation3 + $0x78] sm:$0xff]
    %v155 = vld [vmem:[%s1] sm:$0xff]
    %v156 = vld [vmem:[%s1 + $0x8] sm:$0xff]
    %v157 = vlaneseq
    %v158 = vshrl.u32 %v157, 7
    %v159 = vsub.s32 0, %v158
    %v160 = vrot.slane %v155, %v159
    %162 = vbcast.lane.b32.xlu0 %v160, 256
    %v163 = vpop.permute.xlu0 %162
    %v164 = vlaneseq
    %v165 = vshrl.u32 %v164, 7
    %v166 = vsub.s32 1, %v165
    %v167 = vrot.slane %v155, %v166
    %169 = vbcast.lane.b32.xlu0 %v167, 256
    %v170 = vpop.permute.xlu0 %169
    %v171 = vlaneseq
    %v172 = vshrl.u32 %v171, 7
    %v173 = vsub.s32 2, %v172
    %v174 = vrot.slane %v155, %v173
    %176 = vbcast.lane.b32.xlu0 %v174, 256
    %v177 = vpop.permute.xlu0 %176
    %v178 = vlaneseq
    %v179 = vshrl.u32 %v178, 7
    %v180 = vsub.s32 3, %v179
    %v181 = vrot.slane %v155, %v180
    %183 = vbcast.lane.b32.xlu0 %v181, 256
    %v184 = vpop.permute.xlu0 %183
    %v185 = vlaneseq
    %v186 = vshrl.u32 %v185, 7
    %v187 = vsub.s32 4, %v186
    %v188 = vrot.slane %v155, %v187
    %190 = vbcast.lane.b32.xlu0 %v188, 256
    %v191 = vpop.permute.xlu0 %190
    %v192 = vlaneseq
    %v193 = vshrl.u32 %v192, 7
    %v194 = vsub.s32 5, %v193
    %v195 = vrot.slane %v155, %v194
    %197 = vbcast.lane.b32.xlu0 %v195, 256
    %v198 = vpop.permute.xlu0 %197
    %v199 = vlaneseq
    %v200 = vshrl.u32 %v199, 7
    %v201 = vsub.s32 6, %v200
    %v202 = vrot.slane %v155, %v201
    %204 = vbcast.lane.b32.xlu0 %v202, 256
    %v205 = vpop.permute.xlu0 %204
    %v206 = vlaneseq
    %v207 = vshrl.u32 %v206, 7
    %v208 = vsub.s32 7, %v207
    %v209 = vrot.slane %v155, %v208
    %211 = vbcast.lane.b32.xlu0 %v209, 256
    %v212 = vpop.permute.xlu0 %211
    %v213 = vlaneseq
    %v214 = vshrl.u32 %v213, 7
    %v215 = vsub.s32 0, %v214
    %v216 = vrot.slane %v156, %v215
    %218 = vbcast.lane.b32.xlu0 %v216, 256
    %v219 = vpop.permute.xlu0 %218
    %v220 = vlaneseq
    %v221 = vshrl.u32 %v220, 7
    %v222 = vsub.s32 1, %v221
    %v223 = vrot.slane %v156, %v222
    %225 = vbcast.lane.b32.xlu0 %v223, 256
    %v226 = vpop.permute.xlu0 %225
    %v227 = vlaneseq
    %v228 = vshrl.u32 %v227, 7
    %v229 = vsub.s32 2, %v228
    %v230 = vrot.slane %v156, %v229
    %232 = vbcast.lane.b32.xlu0 %v230, 256
    %v233 = vpop.permute.xlu0 %232
    %v234 = vlaneseq
    %v235 = vshrl.u32 %v234, 7
    %v236 = vsub.s32 3, %v235
    %v237 = vrot.slane %v156, %v236
    %239 = vbcast.lane.b32.xlu0 %v237, 256
    %v240 = vpop.permute.xlu0 %239
    %v241 = vlaneseq
    %v242 = vshrl.u32 %v241, 7
    %v243 = vsub.s32 4, %v242
    %v244 = vrot.slane %v156, %v243
    %246 = vbcast.lane.b32.xlu0 %v244, 256
    %v247 = vpop.permute.xlu0 %246
    %v248 = vlaneseq
    %v249 = vshrl.u32 %v248, 7
    %v250 = vsub.s32 5, %v249
    %v251 = vrot.slane %v156, %v250
    %253 = vbcast.lane.b32.xlu0 %v251, 256
    %v254 = vpop.permute.xlu0 %253
    %v255 = vlaneseq
    %v256 = vshrl.u32 %v255, 7
    %v257 = vsub.s32 6, %v256
    %v258 = vrot.slane %v156, %v257
    %260 = vbcast.lane.b32.xlu0 %v258, 256
    %v261 = vpop.permute.xlu0 %260
    %v262 = vlaneseq
    %v263 = vshrl.u32 %v262, 7
    %v264 = vsub.s32 7, %v263
    %v265 = vrot.slane %v156, %v264
    %267 = vbcast.lane.b32.xlu0 %v265, 256
    %v268 = vpop.permute.xlu0 %267
    %v269 = vmul.f32 %v139, %v163
    %v270 = vmul.f32 %v140, %v170
    %v271 = vmul.f32 %v141, %v177
    %v272 = vmul.f32 %v142, %v184
    %v273 = vmul.f32 %v143, %v191
    %v274 = vmul.f32 %v144, %v198
    %v275 = vmul.f32 %v145, %v205
    %v276 = vmul.f32 %v146, %v212
    %v277 = vmul.f32 %v147, %v219
    %v278 = vmul.f32 %v148, %v226
    %v279 = vmul.f32 %v149, %v233
    %v280 = vmul.f32 %v150, %v240
    %v281 = vmul.f32 %v151, %v247
    %v282 = vmul.f32 %v152, %v254
    %v283 = vmul.f32 %v153, %v261
    %v284 = vmul.f32 %v154, %v268
    %v285 = vrot.slane %v269, 4
    %v286 = vadd.f32 %v269, %v285
    %v287 = vrot.slane %v286, 2
    %v288 = vadd.f32 %v286, %v287
    %v289 = vrot.slane %v288, 1
    %v290 = vadd.f32 %v288, %v289
    %v291 = vrot.slane %v270, 4
    %v292 = vadd.f32 %v270, %v291
    %v293 = vrot.slane %v292, 2
    %v294 = vadd.f32 %v292, %v293
    %v295 = vrot.slane %v294, 1
    %v296 = vadd.f32 %v294, %v295
    %v297 = vrot.slane %v271, 4
    %v298 = vadd.f32 %v271, %v297
    %v299 = vrot.slane %v298, 2
    %v300 = vadd.f32 %v298, %v299
    %v301 = vrot.slane %v300, 1
    %v302 = vadd.f32 %v300, %v301
    %v303 = vrot.slane %v272, 4
    %v304 = vadd.f32 %v272, %v303
    %v305 = vrot.slane %v304, 2
    %v306 = vadd.f32 %v304, %v305
    %v307 = vrot.slane %v306, 1
    %v308 = vadd.f32 %v306, %v307
    %v309 = vrot.slane %v273, 4
    %v310 = vadd.f32 %v273, %v309
    %v311 = vrot.slane %v310, 2
    %v312 = vadd.f32 %v310, %v311
    %v313 = vrot.slane %v312, 1
    %v314 = vadd.f32 %v312, %v313
    %v315 = vrot.slane %v274, 4
    %v316 = vadd.f32 %v274, %v315
    %v317 = vrot.slane %v316, 2
    %v318 = vadd.f32 %v316, %v317
    %v319 = vrot.slane %v318, 1
    %v320 = vadd.f32 %v318, %v319
    %v321 = vrot.slane %v275, 4
    %v322 = vadd.f32 %v275, %v321
    %v323 = vrot.slane %v322, 2
    %v324 = vadd.f32 %v322, %v323
    %v325 = vrot.slane %v324, 1
    %v326 = vadd.f32 %v324, %v325
    %v327 = vrot.slane %v276, 4
    %v328 = vadd.f32 %v276, %v327
    %v329 = vrot.slane %v328, 2
    %v330 = vadd.f32 %v328, %v329
    %v331 = vrot.slane %v330, 1
    %v332 = vadd.f32 %v330, %v331
    %v333 = vrot.slane %v277, 4
    %v334 = vadd.f32 %v277, %v333
    %v335 = vrot.slane %v334, 2
    %v336 = vadd.f32 %v334, %v335
    %v337 = vrot.slane %v336, 1
    %v338 = vadd.f32 %v336, %v337
    %v339 = vrot.slane %v278, 4
    %v340 = vadd.f32 %v278, %v339
    %v341 = vrot.slane %v340, 2
    %v342 = vadd.f32 %v340, %v341
    %v343 = vrot.slane %v342, 1
    %v344 = vadd.f32 %v342, %v343
    %v345 = vrot.slane %v279, 4
    %v346 = vadd.f32 %v279, %v345
    %v347 = vrot.slane %v346, 2
    %v348 = vadd.f32 %v346, %v347
    %v349 = vrot.slane %v348, 1
    %v350 = vadd.f32 %v348, %v349
    %v351 = vrot.slane %v280, 4
    %v352 = vadd.f32 %v280, %v351
    %v353 = vrot.slane %v352, 2
    %v354 = vadd.f32 %v352, %v353
    %v355 = vrot.slane %v354, 1
    %v356 = vadd.f32 %v354, %v355
    %v357 = vrot.slane %v281, 4
    %v358 = vadd.f32 %v281, %v357
    %v359 = vrot.slane %v358, 2
    %v360 = vadd.f32 %v358, %v359
    %v361 = vrot.slane %v360, 1
    %v362 = vadd.f32 %v360, %v361
    %v363 = vrot.slane %v282, 4
    %v364 = vadd.f32 %v282, %v363
    %v365 = vrot.slane %v364, 2
    %v366 = vadd.f32 %v364, %v365
    %v367 = vrot.slane %v366, 1
    %v368 = vadd.f32 %v366, %v367
    %v369 = vrot.slane %v283, 4
    %v370 = vadd.f32 %v283, %v369
    %v371 = vrot.slane %v370, 2
    %v372 = vadd.f32 %v370, %v371
    %v373 = vrot.slane %v372, 1
    %v374 = vadd.f32 %v372, %v373
    %v375 = vrot.slane %v284, 4
    %v376 = vadd.f32 %v284, %v375
    %v377 = vrot.slane %v376, 2
    %v378 = vadd.f32 %v376, %v377
    %v379 = vrot.slane %v378, 1
    %v380 = vadd.f32 %v378, %v379
    %v381 = vmul.f32 %v290, 0.125
    %v382 = vmul.f32 %v296, 0.125
    %v383 = vmul.f32 %v302, 0.125
    %v384 = vmul.f32 %v308, 0.125
    %v385 = vmul.f32 %v314, 0.125
    %v386 = vmul.f32 %v320, 0.125
    %v387 = vmul.f32 %v326, 0.125
    %v388 = vmul.f32 %v332, 0.125
    %v389 = vmul.f32 %v338, 0.125
    %v390 = vmul.f32 %v344, 0.125
    %v391 = vmul.f32 %v350, 0.125
    %v392 = vmul.f32 %v356, 0.125
    %v393 = vmul.f32 %v362, 0.125
    %v394 = vmul.f32 %v368, 0.125
    %v395 = vmul.f32 %v374, 0.125
    %v396 = vmul.f32 %v380, 0.125
    %v397 = vld [vmem:[#allocation9] sm:$0xff]
    %v398 = vld [vmem:[#allocation9 + $0x8] sm:$0xff]
    %v399 = vld [vmem:[#allocation9 + $0x10] sm:$0xff]
    %v400 = vld [vmem:[#allocation9 + $0x18] sm:$0xff]
    %v401 = vld [vmem:[#allocation9 + $0x20] sm:$0xff]
    %v402 = vld [vmem:[#allocation9 + $0x28] sm:$0xff]
    %v403 = vld [vmem:[#allocation9 + $0x30] sm:$0xff]
    %v404 = vld [vmem:[#allocation9 + $0x38] sm:$0xff]
    %v405 = vld [vmem:[#allocation9 + $0x40] sm:$0xff]
    %v406 = vld [vmem:[#allocation9 + $0x48] sm:$0xff]
    %v407 = vld [vmem:[#allocation9 + $0x50] sm:$0xff]
    %v408 = vld [vmem:[#allocation9 + $0x58] sm:$0xff]
    %v409 = vld [vmem:[#allocation9 + $0x60] sm:$0xff]
    %v410 = vld [vmem:[#allocation9 + $0x68] sm:$0xff]
    %v411 = vld [vmem:[#allocation9 + $0x70] sm:$0xff]
    %v412 = vld [vmem:[#allocation9 + $0x78] sm:$0xff]
    %v413 = vld [vmem:[#allocation10] sm:$0xff]
    %v414 = vld [vmem:[#allocation10 + $0x8] sm:$0xff]
    %v415 = vld [vmem:[#allocation10 + $0x10] sm:$0xff]
    %v416 = vld [vmem:[#allocation10 + $0x18] sm:$0xff]
    %v417 = vld [vmem:[#allocation10 + $0x20] sm:$0xff]
    %v418 = vld [vmem:[#allocation10 + $0x28] sm:$0xff]
    %v419 = vld [vmem:[#allocation10 + $0x30] sm:$0xff]
    %v420 = vld [vmem:[#allocation10 + $0x38] sm:$0xff]
    %v421 = vld [vmem:[#allocation10 + $0x40] sm:$0xff]
    %v422 = vld [vmem:[#allocation10 + $0x48] sm:$0xff]
    %v423 = vld [vmem:[#allocation10 + $0x50] sm:$0xff]
    %v424 = vld [vmem:[#allocation10 + $0x58] sm:$0xff]
    %v425 = vld [vmem:[#allocation10 + $0x60] sm:$0xff]
    %v426 = vld [vmem:[#allocation10 + $0x68] sm:$0xff]
    %v427 = vld [vmem:[#allocation10 + $0x70] sm:$0xff]
    %v428 = vld [vmem:[#allocation10 + $0x78] sm:$0xff]
    %vm437 = vcmask 1041409
    %v438 = vsel %vm437, %v390, %v389
    %vm439 = vcmask 1042434
    %v440 = vsel %vm439, %v391, %v438
    %vm441 = vcmask 1043459
    %v442 = vsel %vm441, %v392, %v440
    %vm443 = vcmask 1044484
    %v444 = vsel %vm443, %v393, %v442
    %vm445 = vcmask 1045509
    %v446 = vsel %vm445, %v394, %v444
    %vm447 = vcmask 1046534
    %v448 = vsel %vm447, %v395, %v446
    %vm449 = vcmask 1047559
    %v450 = vsel %vm449, %v396, %v448
    %452 = vmatprep.subr.mxu0 0.0
    %453 = vmatpush1.msra.mxu0 %v428
    %454 = vmatprep.subr.mxu0 0.0
    %455 = vmatpush1.msra.mxu0 %v427
    %456 = vmatprep.subr.mxu0 0.0
    %457 = vmatpush1.msra.mxu0 %v426
    %458 = vmatprep.subr.mxu0 0.0
    %459 = vmatpush1.msra.mxu0 %v425
    %460 = vmatprep.subr.mxu0 0.0
    %461 = vmatpush1.msra.mxu0 %v424
    %462 = vmatprep.subr.mxu0 0.0
    %463 = vmatpush1.msra.mxu0 %v423
    %464 = vmatprep.subr.mxu0 0.0
    %465 = vmatpush1.msra.mxu0 %v422
    %466 = vmatprep.subr.mxu0 0.0
    %467 = vmatpush1.msra.mxu0 %v421
    %468 = vmatprep.subr.mxu0 0.0
    %469 = vmatpush1.msra.mxu0 %v420
    %470 = vmatprep.subr.mxu0 0.0
    %471 = vmatpush1.msra.mxu0 %v419
    %472 = vmatprep.subr.mxu0 0.0
    %473 = vmatpush1.msra.mxu0 %v418
    %474 = vmatprep.subr.mxu0 0.0
    %475 = vmatpush1.msra.mxu0 %v417
    %476 = vmatprep.subr.mxu0 0.0
    %477 = vmatpush1.msra.mxu0 %v416
    %478 = vmatprep.subr.mxu0 0.0
    %479 = vmatpush1.msra.mxu0 %v415
    %480 = vmatprep.subr.mxu0 0.0
    %481 = vmatpush1.msra.mxu0 %v414
    %482 = vmatprep.subr.mxu0 0.0
    %483 = vmatpush1.msra.mxu0 %v413
    %484 = vmatprep.subr.mxu0 0.0
    %485 = vmatpush2.msra.mxu0 0.0
    %486 = vmatprep.subr.mxu0 0.0
    %487 = vmatpush2.msra.mxu0 0.0
    %488 = vmatprep.subr.mxu0 0.0
    %489 = vmatpush2.msra.mxu0 0.0
    %490 = vmatprep.subr.mxu0 0.0
    %491 = vmatpush2.msra.mxu0 0.0
    %492 = vmatprep.subr.mxu0 0.0
    %493 = vmatpush2.msra.mxu0 0.0
    %494 = vmatprep.subr.mxu0 0.0
    %495 = vmatpush2.msra.mxu0 0.0
    %496 = vmatprep.subr.mxu0 0.0
    %497 = vmatpush2.msra.mxu0 0.0
    %498 = vmatprep.subr.mxu0 0.0
    %499 = vmatpush2.msra.mxu0 0.0
    %500 = vmatprep.subr.mxu0 0.0
    %501 = vmatpush2.msra.mxu0 0.0
    %502 = vmatprep.subr.mxu0 0.0
    %503 = vmatpush2.msra.mxu0 0.0
    %504 = vmatprep.subr.mxu0 0.0
    %505 = vmatpush2.msra.mxu0 0.0
    %506 = vmatprep.subr.mxu0 0.0
    %507 = vmatpush2.msra.mxu0 0.0
    %508 = vmatprep.subr.mxu0 0.0
    %509 = vmatpush2.msra.mxu0 0.0
    %510 = vmatprep.subr.mxu0 0.0
    %511 = vmatpush2.msra.mxu0 0.0
    %512 = vmatprep.subr.mxu0 0.0
    %513 = vmatpush2.msra.mxu0 0.0
    %514 = vmatprep.subr.mxu0 0.0
    %515 = vmatpush2.msra.mxu0 0.0
    %516 = vmatprep.mubr.f32.mxu0 0.0
    %517 = vmatmul.mubr.f32.gmra.mxu0 %v450
    %v518 = vpop.f32.mrf.mxu0
    %v519 = vadd.f32 0.0, %v518
    %v520 = vpop.f32.mrf.mxu0
    %521 = vdwg.mxu0
    %v530 = vsel %vm437, %v382, %v381
    %v531 = vsel %vm439, %v383, %v530
    %v532 = vsel %vm441, %v384, %v531
    %v533 = vsel %vm443, %v385, %v532
    %v534 = vsel %vm445, %v386, %v533
    %v535 = vsel %vm447, %v387, %v534
    %v536 = vsel %vm449, %v388, %v535
    %538 = vmatprep.subr.mxu0 0.0
    %539 = vmatpush1.msra.mxu0 %v412
    %540 = vmatprep.subr.mxu0 0.0
    %541 = vmatpush1.msra.mxu0 %v411
    %542 = vmatprep.subr.mxu0 0.0
    %543 = vmatpush1.msra.mxu0 %v410
    %544 = vmatprep.subr.mxu0 0.0
    %545 = vmatpush1.msra.mxu0 %v409
    %546 = vmatprep.subr.mxu0 0.0
    %547 = vmatpush1.msra.mxu0 %v408
    %548 = vmatprep.subr.mxu0 0.0
    %549 = vmatpush1.msra.mxu0 %v407
    %550 = vmatprep.subr.mxu0 0.0
    %551 = vmatpush1.msra.mxu0 %v406
    %552 = vmatprep.subr.mxu0 0.0
    %553 = vmatpush1.msra.mxu0 %v405
    %554 = vmatprep.subr.mxu0 0.0
    %555 = vmatpush1.msra.mxu0 %v404
    %556 = vmatprep.subr.mxu0 0.0
    %557 = vmatpush1.msra.mxu0 %v403
    %558 = vmatprep.subr.mxu0 0.0
    %559 = vmatpush1.msra.mxu0 %v402
    %560 = vmatprep.subr.mxu0 0.0
    %561 = vmatpush1.msra.mxu0 %v401
    %562 = vmatprep.subr.mxu0 0.0
    %563 = vmatpush1.msra.mxu0 %v400
    %564 = vmatprep.subr.mxu0 0.0
    %565 = vmatpush1.msra.mxu0 %v399
    %566 = vmatprep.subr.mxu0 0.0
    %567 = vmatpush1.msra.mxu0 %v398
    %568 = vmatprep.subr.mxu0 0.0
    %569 = vmatpush1.msra.mxu0 %v397
    %570 = vmatprep.subr.mxu0 0.0
    %571 = vmatpush2.msra.mxu0 0.0
    %572 = vmatprep.subr.mxu0 0.0
    %573 = vmatpush2.msra.mxu0 0.0
    %574 = vmatprep.subr.mxu0 0.0
    %575 = vmatpush2.msra.mxu0 0.0
    %576 = vmatprep.subr.mxu0 0.0
    %577 = vmatpush2.msra.mxu0 0.0
    %578 = vmatprep.subr.mxu0 0.0
    %579 = vmatpush2.msra.mxu0 0.0
    %580 = vmatprep.subr.mxu0 0.0
    %581 = vmatpush2.msra.mxu0 0.0
    %582 = vmatprep.subr.mxu0 0.0
    %583 = vmatpush2.msra.mxu0 0.0
    %584 = vmatprep.subr.mxu0 0.0
    %585 = vmatpush2.msra.mxu0 0.0
    %586 = vmatprep.subr.mxu0 0.0
    %587 = vmatpush2.msra.mxu0 0.0
    %588 = vmatprep.subr.mxu0 0.0
    %589 = vmatpush2.msra.mxu0 0.0
    %590 = vmatprep.subr.mxu0 0.0
    %591 = vmatpush2.msra.mxu0 0.0
    %592 = vmatprep.subr.mxu0 0.0
    %593 = vmatpush2.msra.mxu0 0.0
    %594 = vmatprep.subr.mxu0 0.0
    %595 = vmatpush2.msra.mxu0 0.0
    %596 = vmatprep.subr.mxu0 0.0
    %597 = vmatpush2.msra.mxu0 0.0
    %598 = vmatprep.subr.mxu0 0.0
    %599 = vmatpush2.msra.mxu0 0.0
    %600 = vmatprep.subr.mxu0 0.0
    %601 = vmatpush2.msra.mxu0 0.0
    %602 = vmatprep.mubr.f32.mxu0 0.0
    %603 = vmatmul.mubr.f32.gmra.mxu0 %v536
    %v604 = vpop.f32.mrf.mxu0
    %v605 = vadd.f32 %v519, %v604
    %v606 = vpop.f32.mrf.mxu0
    %607 = vdwg.mxu0
    %v608 = vmax.f32 %v605, 0.0
    %v609 = vld [vmem:[#allocation12] sm:$0xff]
    %v610 = vld [vmem:[#allocation12 + $0x8] sm:$0xff]
    %v611 = vld [vmem:[#allocation12 + $0x10] sm:$0xff]
    %v612 = vld [vmem:[#allocation12 + $0x18] sm:$0xff]
    %v613 = vld [vmem:[#allocation12 + $0x20] sm:$0xff]
    %v614 = vld [vmem:[#allocation12 + $0x28] sm:$0xff]
    %v615 = vld [vmem:[#allocation12 + $0x30] sm:$0xff]
    %v616 = vld [vmem:[#allocation12 + $0x38] sm:$0xff]
    %v617 = vld [vmem:[#allocation12 + $0x40] sm:$0xff]
    %v618 = vld [vmem:[#allocation12 + $0x48] sm:$0xff]
    %v619 = vld [vmem:[#allocation12 + $0x50] sm:$0xff]
    %v620 = vld [vmem:[#allocation12 + $0x58] sm:$0xff]
    %v621 = vld [vmem:[#allocation12 + $0x60] sm:$0xff]
    %v622 = vld [vmem:[#allocation12 + $0x68] sm:$0xff]
    %v623 = vld [vmem:[#allocation12 + $0x70] sm:$0xff]
    %v624 = vld [vmem:[#allocation12 + $0x78] sm:$0xff]
    %625 = vmatprep.subr.mxu0 0.0
    %626 = vmatpush1.msra.mxu0 %v624
    %627 = vmatprep.subr.mxu0 0.0
    %628 = vmatpush1.msra.mxu0 %v623
    %629 = vmatprep.subr.mxu0 0.0
    %630 = vmatpush1.msra.mxu0 %v622
    %631 = vmatprep.subr.mxu0 0.0
    %632 = vmatpush1.msra.mxu0 %v621
    %633 = vmatprep.subr.mxu0 0.0
    %634 = vmatpush1.msra.mxu0 %v620
    %635 = vmatprep.subr.mxu0 0.0
    %636 = vmatpush1.msra.mxu0 %v619
    %637 = vmatprep.subr.mxu0 0.0
    %638 = vmatpush1.msra.mxu0 %v618
    %639 = vmatprep.subr.mxu0 0.0
    %640 = vmatpush1.msra.mxu0 %v617
    %641 = vmatprep.subr.mxu0 0.0
    %642 = vmatpush1.msra.mxu0 %v616
    %643 = vmatprep.subr.mxu0 0.0
    %644 = vmatpush1.msra.mxu0 %v615
    %645 = vmatprep.subr.mxu0 0.0
    %646 = vmatpush1.msra.mxu0 %v614
    %647 = vmatprep.subr.mxu0 0.0
    %648 = vmatpush1.msra.mxu0 %v613
    %649 = vmatprep.subr.mxu0 0.0
    %650 = vmatpush1.msra.mxu0 %v612
    %651 = vmatprep.subr.mxu0 0.0
    %652 = vmatpush1.msra.mxu0 %v611
    %653 = vmatprep.subr.mxu0 0.0
    %654 = vmatpush1.msra.mxu0 %v610
    %655 = vmatprep.subr.mxu0 0.0
    %656 = vmatpush1.msra.mxu0 %v609
    %657 = vmatprep.subr.mxu0 0.0
    %658 = vmatpush2.msra.mxu0 0.0
    %659 = vmatprep.subr.mxu0 0.0
    %660 = vmatpush2.msra.mxu0 0.0
    %661 = vmatprep.subr.mxu0 0.0
    %662 = vmatpush2.msra.mxu0 0.0
    %663 = vmatprep.subr.mxu0 0.0
    %664 = vmatpush2.msra.mxu0 0.0
    %665 = vmatprep.subr.mxu0 0.0
    %666 = vmatpush2.msra.mxu0 0.0
    %667 = vmatprep.subr.mxu0 0.0
    %668 = vmatpush2.msra.mxu0 0.0
    %669 = vmatprep.subr.mxu0 0.0
    %670 = vmatpush2.msra.mxu0 0.0
    %671 = vmatprep.subr.mxu0 0.0
    %672 = vmatpush2.msra.mxu0 0.0
    %673 = vmatprep.subr.mxu0 0.0
    %674 = vmatpush2.msra.mxu0 0.0
    %675 = vmatprep.subr.mxu0 0.0
    %676 = vmatpush2.msra.mxu0 0.0
    %677 = vmatprep.subr.mxu0 0.0
    %678 = vmatpush2.msra.mxu0 0.0
    %679 = vmatprep.subr.mxu0 0.0
    %680 = vmatpush2.msra.mxu0 0.0
    %681 = vmatprep.subr.mxu0 0.0
    %682 = vmatpush2.msra.mxu0 0.0
    %683 = vmatprep.subr.mxu0 0.0
    %684 = vmatpush2.msra.mxu0 0.0
    %685 = vmatprep.subr.mxu0 0.0
    %686 = vmatpush2.msra.mxu0 0.0
    %687 = vmatprep.subr.mxu0 0.0
    %688 = vmatpush2.msra.mxu0 0.0
    %689 = vmatprep.mubr.f32.mxu0 0.0
    %690 = vmatmul.mubr.f32.gmra.mxu0 %v608
    %v691 = vpop.f32.mrf.mxu0
    %v692 = vadd.f32 0.0, %v691
    %v693 = vpop.f32.mrf.mxu0
    %694 = vdwg.mxu0
    %v695 = vmax.f32 %v692, 0.0
    %v696 = vld [vmem:[#allocation13] sm:$0xff]
    %v697 = vld [vmem:[#allocation13 + $0x8] sm:$0xff]
    %v698 = vld [vmem:[#allocation13 + $0x10] sm:$0xff]
    %v699 = vld [vmem:[#allocation13 + $0x18] sm:$0xff]
    %v700 = vld [vmem:[#allocation13 + $0x20] sm:$0xff]
    %v701 = vld [vmem:[#allocation13 + $0x28] sm:$0xff]
    %v702 = vld [vmem:[#allocation13 + $0x30] sm:$0xff]
    %v703 = vld [vmem:[#allocation13 + $0x38] sm:$0xff]
    %v704 = vld [vmem:[#allocation13 + $0x40] sm:$0xff]
    %v705 = vld [vmem:[#allocation13 + $0x48] sm:$0xff]
    %v706 = vld [vmem:[#allocation13 + $0x50] sm:$0xff]
    %v707 = vld [vmem:[#allocation13 + $0x58] sm:$0xff]
    %v708 = vld [vmem:[#allocation13 + $0x60] sm:$0xff]
    %v709 = vld [vmem:[#allocation13 + $0x68] sm:$0xff]
    %v710 = vld [vmem:[#allocation13 + $0x70] sm:$0xff]
    %v711 = vld [vmem:[#allocation13 + $0x78] sm:$0xff]
    %712 = vmatprep.subr.mxu0 0.0
    %713 = vmatpush1.msra.mxu0 %v711
    %714 = vmatprep.subr.mxu0 0.0
    %715 = vmatpush1.msra.mxu0 %v710
    %716 = vmatprep.subr.mxu0 0.0
    %717 = vmatpush1.msra.mxu0 %v709
    %718 = vmatprep.subr.mxu0 0.0
    %719 = vmatpush1.msra.mxu0 %v708
    %720 = vmatprep.subr.mxu0 0.0
    %721 = vmatpush1.msra.mxu0 %v707
    %722 = vmatprep.subr.mxu0 0.0
    %723 = vmatpush1.msra.mxu0 %v706
    %724 = vmatprep.subr.mxu0 0.0
    %725 = vmatpush1.msra.mxu0 %v705
    %726 = vmatprep.subr.mxu0 0.0
    %727 = vmatpush1.msra.mxu0 %v704
    %728 = vmatprep.subr.mxu0 0.0
    %729 = vmatpush1.msra.mxu0 %v703
    %730 = vmatprep.subr.mxu0 0.0
    %731 = vmatpush1.msra.mxu0 %v702
    %732 = vmatprep.subr.mxu0 0.0
    %733 = vmatpush1.msra.mxu0 %v701
    %734 = vmatprep.subr.mxu0 0.0
    %735 = vmatpush1.msra.mxu0 %v700
    %736 = vmatprep.subr.mxu0 0.0
    %737 = vmatpush1.msra.mxu0 %v699
    %738 = vmatprep.subr.mxu0 0.0
    %739 = vmatpush1.msra.mxu0 %v698
    %740 = vmatprep.subr.mxu0 0.0
    %741 = vmatpush1.msra.mxu0 %v697
    %742 = vmatprep.subr.mxu0 0.0
    %743 = vmatpush1.msra.mxu0 %v696
    %744 = vmatprep.subr.mxu0 0.0
    %745 = vmatpush2.msra.mxu0 0.0
    %746 = vmatprep.subr.mxu0 0.0
    %747 = vmatpush2.msra.mxu0 0.0
    %748 = vmatprep.subr.mxu0 0.0
    %749 = vmatpush2.msra.mxu0 0.0
    %750 = vmatprep.subr.mxu0 0.0
    %751 = vmatpush2.msra.mxu0 0.0
    %752 = vmatprep.subr.mxu0 0.0
    %753 = vmatpush2.msra.mxu0 0.0
    %754 = vmatprep.subr.mxu0 0.0
    %755 = vmatpush2.msra.mxu0 0.0
    %756 = vmatprep.subr.mxu0 0.0
    %757 = vmatpush2.msra.mxu0 0.0
    %758 = vmatprep.subr.mxu0 0.0
    %759 = vmatpush2.msra.mxu0 0.0
    %760 = vmatprep.subr.mxu0 0.0
    %761 = vmatpush2.msra.mxu0 0.0
    %762 = vmatprep.subr.mxu0 0.0
    %763 = vmatpush2.msra.mxu0 0.0
    %764 = vmatprep.subr.mxu0 0.0
    %765 = vmatpush2.msra.mxu0 0.0
    %766 = vmatprep.subr.mxu0 0.0
    %767 = vmatpush2.msra.mxu0 0.0
    %768 = vmatprep.subr.mxu0 0.0
    %769 = vmatpush2.msra.mxu0 0.0
    %770 = vmatprep.subr.mxu0 0.0
    %771 = vmatpush2.msra.mxu0 0.0
    %772 = vmatprep.subr.mxu0 0.0
    %773 = vmatpush2.msra.mxu0 0.0
    %774 = vmatprep.subr.mxu0 0.0
    %775 = vmatpush2.msra.mxu0 0.0
    %776 = vmatprep.mubr.f32.mxu0 0.0
    %777 = vmatmul.mubr.f32.gmra.mxu0 %v695
    %v778 = vpop.f32.mrf.mxu0
    %v779 = vadd.f32 0.0, %v778
    %v780 = vpop.f32.mrf.mxu0
    %781 = vdwg.mxu0
    %v782 = vlaneseq
    %v783 = vand.u32 %v782, 127
    %vm784 = vcmp.lt.s32.totalorder %v783, 2
    %v785 = vsel %vm784, %v779, -inf
    %786 = vmax.xlane.f32.xlu0 %v785
    %v787 = vpop.xlane.xlu0 %786
    %v788 = vsub.f32 %v785, %v787
    %v789 = vmul.f32 %v788, 1.442695
    %v790 = vpow.pop %v789
    %791 = vadd.xlane.f32.xlu0 %v790
    %v792 = vpop.xlane.xlu0 %791
    %v793 = vrcp.pop %v792
    %v794 = vmul.f32 %v790, %v793
    %795 = vst [vmem:[#allocation15] sm:$0xff] %v779
    %796 = vst [vmem:[#allocation15 + $0x8] sm:$0xff] %v794
    // Predicated region
    $region68: #{tpu_custom_call.1} parent=1 // pred_check
      _
    $region69: #{tpu_custom_call.1} parent=1 // pred_check_branch
      %798 = sbr.rel (0) target = $region71
    $region70: #{tpu_custom_call.1} parent=1 // pred_region
      %s800 = ssub.s32 256, 256
      %801 = vsyncadd [#allocation7], %s800
      %s803 = sshll.u32 [#allocation15], 4
      %s804 = int_to_ptr.vmem [resolvable:$true] %s803
      %806 = dma.vmem_to_hbm [thread:$0]  %s804, 256, %s7, [#allocation7]
    $region71: #{tpu_custom_call.1} parent=1 // pred_fallthru
      _
    // Predicated region
    $region72: #{tpu_custom_call.1} parent=1 // pred_check
      _
    $region73: #{tpu_custom_call.1} parent=1 // pred_check_branch
      %808 = sbr.rel (0) target = $region75
    $region74: #{tpu_custom_call.1} parent=1 // pred_region
      %809 = dma.done [#allocation7], 256
    $region75: #{tpu_custom_call.1} parent=1 // pred_fallthru
      _
    %810 = vsyncpa [#allocation6], 1
    %811 = vsyncpa [#allocation11], 1
    %812 = vsyncpa [#allocation14], 1
    %813 = vsyncpa [#allocation7], 1
    %814 = vsyncpa [#allocation8], 1
  %815 = vsyncmov [#allocation4]
  %s816 = vpop.sfrf %815
  %p817 = scmp.eq.s32.totalorder %s816, 0
  %p818 = pneg %p817
  %820 = shalt.err (%p818)

</llo_original>
